<compile_context>
chip_gen: v7x
topology: tpu7x:2x2x1
jax: 0.10.0
libtpu: 0.0.40
codegen_flags: <defaults>
</compile_context>

<pallas_src>
import functools
import math

import jax
import jax.numpy as jnp
from jax.experimental import pallas as pl
from jax.experimental.pallas import tpu as pltpu

_VMEM_LIMIT = 48 * 1024 * 1024


def _pick_tile(dim, candidates):
    """Largest candidate that evenly divides `dim`, else the full dim."""
    for cand in candidates:
        if dim >= cand and dim % cand == 0:
            return cand
    return dim


# ---------------------------------------------------------------------------
# Kernel 1: tiled matmul, bf16 MXU inputs (A cast in-kernel), f32 accumulation
# ---------------------------------------------------------------------------

def _matmul_kernel(a_ref, b_ref, o_ref, acc_ref):
    @pl.when(pl.program_id(2) == 0)
    def _():
        acc_ref[...] = jnp.zeros_like(acc_ref)

    acc_ref[...] += jnp.dot(a_ref[...].astype(jnp.bfloat16), b_ref[...],
                            preferred_element_type=jnp.float32)

    @pl.when(pl.program_id(2) == pl.num_programs(2) - 1)
    def _():
        o_ref[...] = acc_ref[...].astype(o_ref.dtype)


def _matmul_call(a, b_t, *, out_dtype=jnp.float32,
                 tm_target=256, tn_target=256, tk_target=512):
    """(M,K) f32 @ (K,N) bf16 -> (M,N).  A is cast to bf16 inside the kernel."""
    m, k = a.shape
    k2, nn = b_t.shape
    assert k == k2
    tm = _pick_tile(m, (tm_target, 128, 64, 32, 16))
    tn = _pick_tile(nn, (tn_target, 128))
    tk = _pick_tile(k, (tk_target, 256, 128))
    grid = (m // tm, nn // tn, k // tk)

    return pl.pallas_call(
        _matmul_kernel,
        grid=grid,
        in_specs=[pl.BlockSpec((tm, tk), lambda i, j, kk: (i, kk)),
                  pl.BlockSpec((tk, tn), lambda i, j, kk: (kk, j))],
        out_specs=pl.BlockSpec((tm, tn), lambda i, j, kk: (i, j)),
        out_shape=jax.ShapeDtypeStruct((m, nn), out_dtype),
        scratch_shapes=[pltpu.VMEM((tm, tn), jnp.float32)],
        compiler_params=pltpu.CompilerParams(
            dimension_semantics=("parallel", "parallel", "arbitrary"),
            vmem_limit_bytes=_VMEM_LIMIT),
    )(a, b_t)


# ---------------------------------------------------------------------------
# Kernel 2: per-batch softmax(ek) over kv + context + gamma-scaled proj_conv
# ---------------------------------------------------------------------------

def _attn_ctx_proj_kernel(cv, ekv_ref, exp_ref, pw_ref, pb_ref, o_ref):
    # ekv: (Lkv, Cv+heads) f32; exp: (heads, Cv) 0/1 f32; pw: (Cv, C) f32;
    # pb: (1, C) f32; o: (1, C) f32.
    ekv = ekv_ref[...]
    ek = ekv[:, cv:]                                        # (Lkv, heads)
    m = jnp.max(ek, axis=0, keepdims=True)
    p = jnp.exp(ek - m)
    s = jnp.sum(p, axis=0, keepdims=True)
    attn = p / s                                            # (Lkv, heads), softmax over kv

    # Replicate each head's weight across that head's vd value lanes with a
    # tiny constant 0/1 matmul (no per-head loops / lane relayouts).
    attn_exp = jnp.dot(attn, exp_ref[...],
                       preferred_element_type=jnp.float32)  # (Lkv, Cv)
    ctx = jnp.sum(attn_exp * ekv[:, :cv], axis=0, keepdims=True)  # (1, Cv)

    # proj_conv (1x1, bias), gamma pre-folded into the weights/bias.
    out = jnp.dot(ctx, pw_ref[...], preferred_element_type=jnp.float32) + pb_ref[...]
    o_ref[...] = out.astype(o_ref.dtype)


def _attn_ctx_proj_call(ekv, expand, proj_w_t, proj_b, cv):
    n, l_kv, cph = ekv.shape
    heads = expand.shape[0]
    c = proj_w_t.shape[1]
    kernel = functools.partial(_attn_ctx_proj_kernel, cv)
    return pl.pallas_call(
        kernel,
        grid=(n,),
        in_specs=[
            pl.BlockSpec((None, l_kv, cph), lambda b: (b, 0, 0)),
            pl.BlockSpec((heads, cv), lambda b: (0, 0)),
            pl.BlockSpec((cv, c), lambda b: (0, 0)),
            pl.BlockSpec((1, c), lambda b: (0, 0)),
        ],
        out_specs=pl.BlockSpec((None, 1, c), lambda b: (b, 0, 0)),
        out_shape=jax.ShapeDtypeStruct((n, 1, c), jnp.float32),
        compiler_params=pltpu.CompilerParams(
            dimension_semantics=("parallel",),
            vmem_limit_bytes=_VMEM_LIMIT),
    )(ekv, expand, proj_w_t, proj_b)


# ---------------------------------------------------------------------------
# Kernel 3: residual broadcast-add, directly in NCHW (no output transpose)
# ---------------------------------------------------------------------------

def _residual_kernel(x_ref, v_ref, o_ref):
    o_ref[...] = x_ref[...] + v_ref[...]      # (C, t) + (C, 1) broadcast


def _residual_broadcast_add(x3, vec3):
    """x3: (n, C, H*W) f32, vec3: (n, C, 1) f32 -> x3 + vec3 (broadcast)."""
    n, c, hw = x3.shape
    t = _pick_tile(hw, (2048, 1024, 512, 256, 128))
    return pl.pallas_call(
        _residual_kernel,
        grid=(n, hw // t),
        in_specs=[pl.BlockSpec((None, c, t), lambda b, j: (b, 0, j)),
                  pl.BlockSpec((None, c, 1), lambda b, j: (b, 0, 0))],
        out_specs=pl.BlockSpec((None, c, t), lambda b, j: (b, 0, j)),
        out_shape=jax.ShapeDtypeStruct((n, c, hw), jnp.float32),
        compiler_params=pltpu.CompilerParams(
            dimension_semantics=("parallel", "parallel"),
            vmem_limit_bytes=_VMEM_LIMIT),
    )(x3, vec3)


# ---------------------------------------------------------------------------
# Parameters (mirrors the PyTorch module) and one-time preparation / fusions
# ---------------------------------------------------------------------------

def make_params(key, in_dim, num_heads, deformable_group=1):
    d = in_dim // num_heads
    out_c = d * num_heads
    ks = jax.random.split(key, 7)

    def u(k, shape, fan_in):
        bound = 1.0 / math.sqrt(fan_in)
        return jax.random.uniform(k, shape, jnp.float32, -bound, bound)

    stdv = 1.0 / math.sqrt(2 * d)
    return {
        "key_w": u(ks[0], (out_c, in_dim), in_dim),          # key_conv (1x1, no bias)
        "value_w": u(ks[1], (out_c, in_dim), in_dim),        # value_conv (1x1, no bias)
        "proj_w": u(ks[2], (in_dim, out_c), out_c),          # proj_conv (1x1, bias)
        "proj_b": jnp.zeros((in_dim,), jnp.float32),         # kaiming_init sets bias=0
        "appr_bias": jax.random.uniform(ks[3], (out_c,), jnp.float32, -stdv, stdv),
        # The parameters below exist in the module but do not affect the
        # forward output (their energy term cancels under softmax; see header).
        "offset_w": u(ks[4], (deformable_group * 18, in_dim, 3, 3), in_dim * 9),
        "dconv_w": u(ks[5], (out_c, in_dim, 3, 3), in_dim * 9),
        "appr_bias_qRelPos": jax.random.uniform(ks[6], (out_c,), jnp.float32, -stdv, stdv),
        # Module inits gamma to 0 (output == input); use a nonzero deterministic
        # value here so the attention path actually contributes in this test.
        "gamma": jnp.array([0.1], jnp.float32),
    }


def prepare_params(params, num_heads):
    """Fold appr_bias into key_w, fuse value/key weights, fold gamma into proj."""
    out_c, c = params["key_w"].shape
    d = out_c // num_heads
    vd = params["value_w"].shape[0] // num_heads
    cv = vd * num_heads

    bk = params["appr_bias"].reshape(num_heads, d)
    key_w = params["key_w"].reshape(num_heads, d, c)
    key_bias_w_t = jnp.einsum("hd,hdc->hc", bk, key_w).T          # (C, heads)
    value_w_t = params["value_w"].T                                # (C, Cv)
    # One weight for a single pass over x_kv: [value | key-energy] -> lane-dense output
    vk_w_t = jnp.concatenate([value_w_t, key_bias_w_t], axis=1).astype(jnp.bfloat16)

    gamma = params["gamma"].reshape(())
    # 0/1 head-block expansion matrix: expand[h, j] = 1 iff j // vd == h
    expand = (jnp.arange(cv)[None, :] // vd == jnp.arange(num_heads)[:, None]
              ).astype(jnp.float32)

    return {
        "vk_w_t": vk_w_t,                                          # (C, Cv+heads) bf16
        "expand": expand,                                          # (heads, Cv) f32
        "proj_w_t": (gamma * params["proj_w"]).T.astype(jnp.float32),   # (Cv, C)
        "proj_b": (gamma * params["proj_b"]).reshape(1, -1).astype(jnp.float32),
    }


# ---------------------------------------------------------------------------
# Forward pass
# ---------------------------------------------------------------------------

def novel_kqr_attention_forward(x, prepared, num_heads, kv_stride=2):
    n, c, h, w = x.shape
    cv = prepared["proj_w_t"].shape[0]

    # kv downsample: AvgPool2d(kernel_size=1, stride=kv_stride) == strided subsample
    x_kv = x[:, :, ::kv_stride, ::kv_stride] if kv_stride > 1 else x
    h_kv, w_kv = x_kv.shape[2], x_kv.shape[3]
    l_kv = h_kv * w_kv

    # Only the (small, strided) kv tensor is relayouted to channels-last.
    xkv_cl = jnp.transpose(x_kv, (0, 2, 3, 1)).reshape(n * l_kv, c)

    # ---- fused value_conv + (appr_bias-folded) key_conv: single pass over x_kv
    ekv = _matmul_call(xkv_cl, prepared["vk_w_t"], out_dtype=jnp.float32)
    ekv = ekv.reshape(n, l_kv, cv + num_heads)

    # ---- softmax over kv (once per batch/head) + context + gamma*proj_conv
    vec = _attn_ctx_proj_call(ekv, prepared["expand"], prepared["proj_w_t"],
                              prepared["proj_b"], cv)              # (n, 1, C)

    # ---- residual: out[n,c,h,w] = x[n,c,h,w] + vec[n,c]  (broadcast over h, w)
    out = _residual_broadcast_add(x.reshape(n, c, h * w), vec.reshape(n, c, 1))
    return out.reshape(n, c, h, w)


# ---------------------------------------------------------------------------
# Pure-JAX reference of the module forward (eq cancels under softmax, see header)
# ---------------------------------------------------------------------------

def _reference_forward(x, params, num_heads, kv_stride=2):
    n, c, h, w = x.shape
    d = c // num_heads
    x_kv = x[:, :, ::kv_stride, ::kv_stride] if kv_stride > 1 else x
    l_kv = x_kv.shape[2] * x_kv.shape[3]
    xkv = x_kv.reshape(n, c, l_kv)
    proj_key = jnp.einsum("oc,ncl->nol", params["key_w"], xkv
                          ).reshape(n, num_heads, d, l_kv)
    ek = jnp.einsum("hd,nhdl->nhl", params["appr_bias"].reshape(num_heads, d), proj_key)
    attn = jax.nn.softmax(ek, axis=-1)                              # (n, heads, Lkv)
    proj_val = jnp.einsum("oc,ncl->nol", params["value_w"], xkv
                          ).reshape(n, num_heads, d, l_kv)
    ctx = jnp.einsum("nhl,nhvl->nhv", attn, proj_val).reshape(n, num_heads * d)
    out_vec = ctx @ params["proj_w"].T + params["proj_b"]
    gamma = params["gamma"].reshape(())
    return gamma * out_vec[:, :, None, None] + x


# ---------------------------------------------------------------------------
if __name__ == "__main__":
    in_dim = 16
    num_heads = 4
    n, H, W = 2, 16, 16

    root = jax.random.PRNGKey(0)
    kx, kp = jax.random.split(root)
    x = jax.random.normal(kx, (n, in_dim, H, W), jnp.float32)
    params = make_params(kp, in_dim, num_heads)
    prepared = prepare_params(params, num_heads)

    fwd = jax.jit(novel_kqr_attention_forward,
                  static_argnames=("num_heads", "kv_stride"))
    out = fwd(x, prepared, num_heads=num_heads, kv_stride=2)
    out = jax.block_until_ready(out)

    assert out.shape == x.shape, (out.shape, x.shape)
    assert bool(jnp.all(jnp.isfinite(out)))

    ref = _reference_forward(x, params, num_heads, kv_stride=2)
    err = float(jnp.max(jnp.abs(out - ref)))
    assert err < 2e-2, f"max abs err vs reference: {err}"

    print("KERNEL_OK")
</pallas_src>

<mosaic_0001>
module attributes {stable_mosaic.version = 11 : i64} {
  func.func @_matmul_kernel(%arg0: i32, %arg1: i32, %arg2: i32, %arg3: memref<128x16xf32, #tpu.memory_space<vmem>>, %arg4: memref<16x20xbf16, #tpu.memory_space<vmem>>, %arg5: memref<128x20xf32, #tpu.memory_space<vmem>>, %arg6: memref<128x20xf32, #tpu.memory_space<vmem>>) attributes {dimension_semantics = [#tpu.dimension_semantics<parallel>, #tpu.dimension_semantics<parallel>, #tpu.dimension_semantics<arbitrary>], iteration_bounds = array<i64: 1, 1, 1>, scalar_prefetch = 0 : i64, scratch_operands = 1 : i64, tpu.core_type = #tpu.core_type<tc>, window_params = [{transform_indices = @transform_0, window_bounds = array<i64: 128, 16>}, {transform_indices = @transform_1, window_bounds = array<i64: 16, 20>}, {transform_indices = @transform_2, window_bounds = array<i64: 128, 20>}]} {
    %c0_i32 = arith.constant 0 : i32
    %0 = arith.cmpi eq, %arg2, %c0_i32 : i32
    %1 = arith.extui %0 : i1 to i32
    %c0_i32_0 = arith.constant 0 : i32
    %2 = arith.cmpi ne, %1, %c0_i32_0 : i32
    scf.if %2 {
      %cst_10 = arith.constant 0.000000e+00 : f32
      %13 = vector.broadcast %cst_10 : f32 to vector<128x20xf32>
      %c0_11 = arith.constant 0 : index
      %c0_12 = arith.constant 0 : index
      %14 = vector.load %arg6[%c0_11, %c0_12] : memref<128x20xf32, #tpu.memory_space<vmem>>, vector<128x20xf32>
      tpu.vector_store %arg6[%c0_11, %c0_12], %13 {strides = array<i32>} : memref<128x20xf32, #tpu.memory_space<vmem>>, vector<128x20xf32>,
    } else {
    }
    %c0 = arith.constant 0 : index
    %c0_1 = arith.constant 0 : index
    %3 = vector.load %arg6[%c0, %c0_1] : memref<128x20xf32, #tpu.memory_space<vmem>>, vector<128x20xf32>
    %c0_2 = arith.constant 0 : index
    %c0_3 = arith.constant 0 : index
    %4 = vector.load %arg3[%c0_2, %c0_3] : memref<128x16xf32, #tpu.memory_space<vmem>>, vector<128x16xf32>
    %5 = arith.truncf %4 : vector<128x16xf32> to vector<128x16xbf16>
    %c0_4 = arith.constant 0 : index
    %c0_5 = arith.constant 0 : index
    %6 = vector.load %arg4[%c0_4, %c0_5] : memref<16x20xbf16, #tpu.memory_space<vmem>>, vector<16x20xbf16>
    %cst = arith.constant dense<0.000000e+00> : vector<128x20xf32>
    %7 = tpu.matmul %5, %6, %cst {dimension_numbers = #tpu.dot_dimension_numbers<[1], [0], [0], [1], [0, 0, 1, 1], [], []>} : vector<128x16xbf16>, vector<16x20xbf16>, vector<128x20xf32> -> vector<128x20xf32>
    %8 = arith.addf %3, %7 : vector<128x20xf32>
    %c0_6 = arith.constant 0 : index
    %c0_7 = arith.constant 0 : index
    %9 = vector.load %arg6[%c0_6, %c0_7] : memref<128x20xf32, #tpu.memory_space<vmem>>, vector<128x20xf32>
    tpu.vector_store %arg6[%c0_6, %c0_7], %8 {strides = array<i32>} : memref<128x20xf32, #tpu.memory_space<vmem>>, vector<128x20xf32>,
    %c0_i32_8 = arith.constant 0 : i32
    %10 = arith.cmpi eq, %arg2, %c0_i32_8 : i32
    %11 = arith.extui %10 : i1 to i32
    %c0_i32_9 = arith.constant 0 : i32
    %12 = arith.cmpi ne, %11, %c0_i32_9 : i32
    scf.if %12 {
      %c0_10 = arith.constant 0 : index
      %c0_11 = arith.constant 0 : index
      %13 = vector.load %arg6[%c0_10, %c0_11] : memref<128x20xf32, #tpu.memory_space<vmem>>, vector<128x20xf32>
      %c0_12 = arith.constant 0 : index
      %c0_13 = arith.constant 0 : index
      %14 = vector.load %arg5[%c0_12, %c0_13] : memref<128x20xf32, #tpu.memory_space<vmem>>, vector<128x20xf32>
      tpu.vector_store %arg5[%c0_12, %c0_13], %13 {strides = array<i32>} : memref<128x20xf32, #tpu.memory_space<vmem>>, vector<128x20xf32>,
    } else {
    }
    return
  }
  func.func @transform_0(%arg0: i32, %arg1: i32, %arg2: i32) -> (i32, i32) {
    %c0_i32 = arith.constant 0 : i32
    return %arg0, %arg2 : i32, i32
  }
  func.func @transform_1(%arg0: i32, %arg1: i32, %arg2: i32) -> (i32, i32) {
    %c0_i32 = arith.constant 0 : i32
    return %arg2, %arg1 : i32, i32
  }
  func.func @transform_2(%arg0: i32, %arg1: i32, %arg2: i32) -> (i32, i32) {
    %c0_i32 = arith.constant 0 : i32
    return %arg0, %arg1 : i32, i32
  }
}

module attributes {stable_mosaic.version = 11 : i64} {
  func.func @_residual_kernel(%arg0: i32, %arg1: i32, %arg2: memref<1x16x256xf32, #tpu.memory_space<vmem>>, %arg3: memref<1x16x1xf32, #tpu.memory_space<vmem>>, %arg4: memref<1x16x256xf32, #tpu.memory_space<vmem>>) attributes {dimension_semantics = [#tpu.dimension_semantics<parallel>, #tpu.dimension_semantics<parallel>], iteration_bounds = array<i64: 2, 1>, scalar_prefetch = 0 : i64, scratch_operands = 0 : i64, tpu.core_type = #tpu.core_type<tc>, window_params = [{transform_indices = @transform_0, window_bounds = array<i64: 1, 16, 256>}, {transform_indices = @transform_1, window_bounds = array<i64: 1, 16, 1>}, {transform_indices = @transform_2, window_bounds = array<i64: 1, 16, 256>}]} {
    %c0 = arith.constant 0 : index
    %c0_0 = arith.constant 0 : index
    %c0_1 = arith.constant 0 : index
    %0 = vector.load %arg2[%c0, %c0_0, %c0_1] : memref<1x16x256xf32, #tpu.memory_space<vmem>>, vector<1x16x256xf32>
    %1 = vector.shape_cast %0 : vector<1x16x256xf32> to vector<16x256xf32>
    %c0_2 = arith.constant 0 : index
    %c0_3 = arith.constant 0 : index
    %c0_4 = arith.constant 0 : index
    %2 = vector.load %arg3[%c0_2, %c0_3, %c0_4] : memref<1x16x1xf32, #tpu.memory_space<vmem>>, vector<1x16x1xf32>
    %3 = vector.shape_cast %2 : vector<1x16x1xf32> to vector<16x1xf32>
    %4 = vector.broadcast %3 : vector<16x1xf32> to vector<16x256xf32>
    %5 = arith.addf %1, %4 : vector<16x256xf32>
    %c0_5 = arith.constant 0 : index
    %c0_6 = arith.constant 0 : index
    %c0_7 = arith.constant 0 : index
    %6 = vector.load %arg4[%c0_5, %c0_6, %c0_7] : memref<1x16x256xf32, #tpu.memory_space<vmem>>, vector<1x16x256xf32>
    %7 = vector.shape_cast %6 : vector<1x16x256xf32> to vector<16x256xf32>
    %8 = vector.shape_cast %5 : vector<16x256xf32> to vector<1x16x256xf32>
    tpu.vector_store %arg4[%c0_5, %c0_6, %c0_7], %8 {strides = array<i32>} : memref<1x16x256xf32, #tpu.memory_space<vmem>>, vector<1x16x256xf32>,
    return
  }
  func.func @transform_0(%arg0: i32, %arg1: i32) -> (i32, i32, i32) {
    %c0_i32 = arith.constant 0 : i32
    %c0_i32_0 = arith.constant 0 : i32
    return %arg0, %c0_i32, %arg1 : i32, i32, i32
  }
  func.func @transform_1(%arg0: i32, %arg1: i32) -> (i32, i32, i32) {
    %c0_i32 = arith.constant 0 : i32
    %c0_i32_0 = arith.constant 0 : i32
    %c0_i32_1 = arith.constant 0 : i32
    return %arg0, %c0_i32, %c0_i32_0 : i32, i32, i32
  }
  func.func @transform_2(%arg0: i32, %arg1: i32) -> (i32, i32, i32) {
    %c0_i32 = arith.constant 0 : i32
    %c0_i32_0 = arith.constant 0 : i32
    return %arg0, %c0_i32, %arg1 : i32, i32, i32
  }
}

module attributes {stable_mosaic.version = 11 : i64} {
  func.func @_attn_ctx_proj_kernel(%arg0: i32, %arg1: memref<1x64x20xf32, #tpu.memory_space<vmem>>, %arg2: memref<4x16xf32, #tpu.memory_space<vmem>>, %arg3: memref<16x16xf32, #tpu.memory_space<vmem>>, %arg4: memref<1x16xf32, #tpu.memory_space<vmem>>, %arg5: memref<1x1x16xf32, #tpu.memory_space<vmem>>) attributes {dimension_semantics = [#tpu.dimension_semantics<parallel>], iteration_bounds = array<i64: 2>, scalar_prefetch = 0 : i64, scratch_operands = 0 : i64, tpu.core_type = #tpu.core_type<tc>, window_params = [{transform_indices = @transform_0, window_bounds = array<i64: 1, 64, 20>}, {pipeline_mode = #tpu.pipeline_mode<synchronous>, transform_indices = @transform_1, window_bounds = array<i64: 4, 16>}, {pipeline_mode = #tpu.pipeline_mode<synchronous>, transform_indices = @transform_2, window_bounds = array<i64: 16, 16>}, {pipeline_mode = #tpu.pipeline_mode<synchronous>, transform_indices = @transform_3, window_bounds = array<i64: 1, 16>}, {transform_indices = @transform_4, window_bounds = array<i64: 1, 1, 16>}]} {
    %c0 = arith.constant 0 : index
    %c0_0 = arith.constant 0 : index
    %c0_1 = arith.constant 0 : index
    %0 = vector.load %arg1[%c0, %c0_0, %c0_1] : memref<1x64x20xf32, #tpu.memory_space<vmem>>, vector<1x64x20xf32>
    %1 = vector.shape_cast %0 : vector<1x64x20xf32> to vector<64x20xf32>
    %2 = vector.extract_strided_slice %1 {offsets = [0, 16], sizes = [64, 4], strides = [1, 1]} : vector<64x20xf32> to vector<64x4xf32>
    %cst = arith.constant dense<0xFF800000> : vector<4xf32>
    %3 = vector.multi_reduction <maximumf>, %2, %cst [0] : vector<64x4xf32> to vector<4xf32>
    %4 = vector.shape_cast %3 : vector<4xf32> to vector<1x4xf32>
    %5 = vector.broadcast %4 : vector<1x4xf32> to vector<64x4xf32>
    %6 = arith.subf %2, %5 : vector<64x4xf32>
    %7 = math.exp %6 : vector<64x4xf32>
    %cst_2 = arith.constant dense<0.000000e+00> : vector<4xf32>
    %8 = vector.multi_reduction <add>, %7, %cst_2 [0] : vector<64x4xf32> to vector<4xf32>
    %9 = vector.shape_cast %8 : vector<4xf32> to vector<1x4xf32>
    %10 = vector.broadcast %9 : vector<1x4xf32> to vector<64x4xf32>
    %11 = arith.divf %7, %10 : vector<64x4xf32>
    %c0_3 = arith.constant 0 : index
    %c0_4 = arith.constant 0 : index
    %12 = vector.load %arg2[%c0_3, %c0_4] : memref<4x16xf32, #tpu.memory_space<vmem>>, vector<4x16xf32>
    %cst_5 = arith.constant dense<0.000000e+00> : vector<64x16xf32>
    %13 = tpu.matmul %11, %12, %cst_5 {dimension_numbers = #tpu.dot_dimension_numbers<[1], [0], [0], [1], [0, 0, 1, 1], [], []>} : vector<64x4xf32>, vector<4x16xf32>, vector<64x16xf32> -> vector<64x16xf32>
    %14 = vector.extract_strided_slice %1 {offsets = [0, 0], sizes = [64, 16], strides = [1, 1]} : vector<64x20xf32> to vector<64x16xf32>
    %15 = arith.mulf %13, %14 : vector<64x16xf32>
    %cst_6 = arith.constant dense<0.000000e+00> : vector<16xf32>
    %16 = vector.multi_reduction <add>, %15, %cst_6 [0] : vector<64x16xf32> to vector<16xf32>
    %17 = vector.shape_cast %16 : vector<16xf32> to vector<1x16xf32>
    %c0_7 = arith.constant 0 : index
    %c0_8 = arith.constant 0 : index
    %18 = vector.load %arg3[%c0_7, %c0_8] : memref<16x16xf32, #tpu.memory_space<vmem>>, vector<16x16xf32>
    %cst_9 = arith.constant dense<0.000000e+00> : vector<1x16xf32>
    %19 = tpu.matmul %17, %18, %cst_9 {dimension_numbers = #tpu.dot_dimension_numbers<[1], [0], [0], [1], [0, 0, 1, 1], [], []>} : vector<1x16xf32>, vector<16x16xf32>, vector<1x16xf32> -> vector<1x16xf32>
    %c0_10 = arith.constant 0 : index
    %c0_11 = arith.constant 0 : index
    %20 = vector.load %arg4[%c0_10, %c0_11] : memref<1x16xf32, #tpu.memory_space<vmem>>, vector<1x16xf32>
    %21 = arith.addf %19, %20 : vector<1x16xf32>
    %c0_12 = arith.constant 0 : index
    %c0_13 = arith.constant 0 : index
    %c0_14 = arith.constant 0 : index
    %22 = vector.load %arg5[%c0_12, %c0_13, %c0_14] : memref<1x1x16xf32, #tpu.memory_space<vmem>>, vector<1x1x16xf32>
    %23 = vector.shape_cast %22 : vector<1x1x16xf32> to vector<1x16xf32>
    %24 = vector.shape_cast %21 : vector<1x16xf32> to vector<1x1x16xf32>
    tpu.vector_store %arg5[%c0_12, %c0_13, %c0_14], %24 {strides = array<i32>} : memref<1x1x16xf32, #tpu.memory_space<vmem>>, vector<1x1x16xf32>,
    return
  }
  func.func @transform_0(%arg0: i32) -> (i32, i32, i32) {
    %c0_i32 = arith.constant 0 : i32
    %c0_i32_0 = arith.constant 0 : i32
    %c0_i32_1 = arith.constant 0 : i32
    return %arg0, %c0_i32, %c0_i32_0 : i32, i32, i32
  }
  func.func @transform_1(%arg0: i32) -> (i32, i32) {
    %c0_i32 = arith.constant 0 : i32
    %c0_i32_0 = arith.constant 0 : i32
    %c0_i32_1 = arith.constant 0 : i32
    return %c0_i32, %c0_i32_0 : i32, i32
  }
  func.func @transform_2(%arg0: i32) -> (i32, i32) {
    %c0_i32 = arith.constant 0 : i32
    %c0_i32_0 = arith.constant 0 : i32
    %c0_i32_1 = arith.constant 0 : i32
    return %c0_i32, %c0_i32_0 : i32, i32
  }
  func.func @transform_3(%arg0: i32) -> (i32, i32) {
    %c0_i32 = arith.constant 0 : i32
    %c0_i32_0 = arith.constant 0 : i32
    %c0_i32_1 = arith.constant 0 : i32
    return %c0_i32, %c0_i32_0 : i32, i32
  }
  func.func @transform_4(%arg0: i32) -> (i32, i32, i32) {
    %c0_i32 = arith.constant 0 : i32
    %c0_i32_0 = arith.constant 0 : i32
    %c0_i32_1 = arith.constant 0 : i32
    return %arg0, %c0_i32, %c0_i32_0 : i32, i32, i32
  }
}

</mosaic_0001>

<llo_original>
// kernel: novel_kqr_attention_forward.3
$region0: #{novel_kqr_attention_forward.3}
  #allocation0 [shape = 'u32[]', space=smem, size = 0x4, offset = 0x4, fixed_abs, tag = 'smem constant byte address 0x4 - core index']
  #allocation1 [shape = 'u32[144,128]{1,0:T(1,128)}', space=vmem, size = 0x12000, scoped, tag = 'internal scratch']
  #allocation2 [shape = 'f32[128,20]{1,0:T(8,128)}', space=vmem, size = 0x10000, scoped, tag = 'scratch operand']
  %s0 = inlined_call_operand.vmem [shape: f32[128,16], index: 0, kind: input, shape index: {}]
  %s1 = inlined_call_operand.vmem [shape: bf16[16,20], index: 1, kind: input, shape index: {}]
  %s2 = inlined_call_operand.vmem [shape: f32[128,20], index: 2, kind: output, shape index: {}]
  %s3 = sld [smem:[#allocation0]]
  $region26: #{novel_kqr_attention_forward.3} parent=0
    _
  %s5 = ssub.s32 1, %s3
  %s6 = scalar_select 0, %s5, %s3
  // Predicated region
  $region2: #{novel_kqr_attention_forward.3} parent=0 // pred_check
    _
  $region3: #{novel_kqr_attention_forward.3} parent=0 // pred_check_branch
    %8 = sbr.rel (0) target = $region5
  $region4: #{novel_kqr_attention_forward.3} parent=0 // pred_region
    _
  $region5: #{novel_kqr_attention_forward.3} parent=0 // pred_fallthru
    _
  // Predicated region
  $region6: #{novel_kqr_attention_forward.3} parent=0 // pred_check
    _
  $region7: #{novel_kqr_attention_forward.3} parent=0 // pred_check_branch
    %10 = sbr.rel (0) target = $region9
  $region8: #{novel_kqr_attention_forward.3} parent=0 // pred_region
    _
  $region9: #{novel_kqr_attention_forward.3} parent=0 // pred_fallthru
    _
  %p12 = scmp.eq.s32.totalorder 0, 0
  // Predicated region
  $region10: #{novel_kqr_attention_forward.3} parent=0 // pred_check
    %p13 = pneg %p12
  $region11: #{novel_kqr_attention_forward.3} parent=0 // pred_check_branch
    %15 = sbr.rel (%p13) target = $region13
  $region12: #{novel_kqr_attention_forward.3} parent=0 // pred_region
    %vm16 = vcmask 162816
    %17 = vst.msk [vmem:[#allocation2] sm:$0xff] %vm16, 0.0
    %18 = vst.msk [vmem:[#allocation2 + $0x8] sm:$0xff] %vm16, 0.0
    %19 = vst.msk [vmem:[#allocation2 + $0x10] sm:$0xff] %vm16, 0.0
    %20 = vst.msk [vmem:[#allocation2 + $0x18] sm:$0xff] %vm16, 0.0
    %21 = vst.msk [vmem:[#allocation2 + $0x20] sm:$0xff] %vm16, 0.0
    %22 = vst.msk [vmem:[#allocation2 + $0x28] sm:$0xff] %vm16, 0.0
    %23 = vst.msk [vmem:[#allocation2 + $0x30] sm:$0xff] %vm16, 0.0
    %24 = vst.msk [vmem:[#allocation2 + $0x38] sm:$0xff] %vm16, 0.0
    %25 = vst.msk [vmem:[#allocation2 + $0x40] sm:$0xff] %vm16, 0.0
    %26 = vst.msk [vmem:[#allocation2 + $0x48] sm:$0xff] %vm16, 0.0
    %27 = vst.msk [vmem:[#allocation2 + $0x50] sm:$0xff] %vm16, 0.0
    %28 = vst.msk [vmem:[#allocation2 + $0x58] sm:$0xff] %vm16, 0.0
    %29 = vst.msk [vmem:[#allocation2 + $0x60] sm:$0xff] %vm16, 0.0
    %30 = vst.msk [vmem:[#allocation2 + $0x68] sm:$0xff] %vm16, 0.0
    %31 = vst.msk [vmem:[#allocation2 + $0x70] sm:$0xff] %vm16, 0.0
    %32 = vst.msk [vmem:[#allocation2 + $0x78] sm:$0xff] %vm16, 0.0
  $region13: #{novel_kqr_attention_forward.3} parent=0 // pred_fallthru
    _
  %v33 = vld [vmem:[#allocation2] sm:$0xff]
  %v34 = vld [vmem:[#allocation2 + $0x8] sm:$0xff]
  %v35 = vld [vmem:[#allocation2 + $0x10] sm:$0xff]
  %v36 = vld [vmem:[#allocation2 + $0x18] sm:$0xff]
  %v37 = vld [vmem:[#allocation2 + $0x20] sm:$0xff]
  %v38 = vld [vmem:[#allocation2 + $0x28] sm:$0xff]
  %v39 = vld [vmem:[#allocation2 + $0x30] sm:$0xff]
  %v40 = vld [vmem:[#allocation2 + $0x38] sm:$0xff]
  %v41 = vld [vmem:[#allocation2 + $0x40] sm:$0xff]
  %v42 = vld [vmem:[#allocation2 + $0x48] sm:$0xff]
  %v43 = vld [vmem:[#allocation2 + $0x50] sm:$0xff]
  %v44 = vld [vmem:[#allocation2 + $0x58] sm:$0xff]
  %v45 = vld [vmem:[#allocation2 + $0x60] sm:$0xff]
  %v46 = vld [vmem:[#allocation2 + $0x68] sm:$0xff]
  %v47 = vld [vmem:[#allocation2 + $0x70] sm:$0xff]
  %v48 = vld [vmem:[#allocation2 + $0x78] sm:$0xff]
  %v49 = vld [vmem:[%s0] sm:$0xff]
  %v50 = vld [vmem:[%s0 + $0x8] sm:$0xff]
  %v51 = vld [vmem:[%s0 + $0x10] sm:$0xff]
  %v52 = vld [vmem:[%s0 + $0x18] sm:$0xff]
  %v53 = vld [vmem:[%s0 + $0x20] sm:$0xff]
  %v54 = vld [vmem:[%s0 + $0x28] sm:$0xff]
  %v55 = vld [vmem:[%s0 + $0x30] sm:$0xff]
  %v56 = vld [vmem:[%s0 + $0x38] sm:$0xff]
  %v57 = vld [vmem:[%s0 + $0x40] sm:$0xff]
  %v58 = vld [vmem:[%s0 + $0x48] sm:$0xff]
  %v59 = vld [vmem:[%s0 + $0x50] sm:$0xff]
  %v60 = vld [vmem:[%s0 + $0x58] sm:$0xff]
  %v61 = vld [vmem:[%s0 + $0x60] sm:$0xff]
  %v62 = vld [vmem:[%s0 + $0x68] sm:$0xff]
  %v63 = vld [vmem:[%s0 + $0x70] sm:$0xff]
  %v64 = vld [vmem:[%s0 + $0x78] sm:$0xff]
  %v65 = vpack.c.bf16 %v50, %v49
  %v66 = vpack.c.bf16 %v52, %v51
  %v67 = vpack.c.bf16 %v54, %v53
  %v68 = vpack.c.bf16 %v56, %v55
  %v69 = vpack.c.bf16 %v58, %v57
  %v70 = vpack.c.bf16 %v60, %v59
  %v71 = vpack.c.bf16 %v62, %v61
  %v72 = vpack.c.bf16 %v64, %v63
  %v73 = vld [vmem:[%s1] sm:$0xf]
  %v74 = vld [vmem:[%s1 + $0x4] sm:$0xf]
  %v77 = vunpack.c.l.b16 %v73
  %v78 = vunpack.c.l.b16 %v74
  %v79 = vpack.c.b16 %v78, %v77
  %vm81 = vcmask 130048
  %v83 = vsel %vm81, %v65, 0
  %v86 = vsel %vm81, %v66, 0
  %v89 = vsel %vm81, %v67, 0
  %v92 = vsel %vm81, %v68, 0
  %v95 = vsel %vm81, %v69, 0
  %v98 = vsel %vm81, %v70, 0
  %v101 = vsel %vm81, %v71, 0
  %v104 = vsel %vm81, %v72, 0
  %106 = vmatprep.subr.bf16.mxu0 0
  %107 = vmatpush1.bf16.msra.mxu0 %v79
  %108 = vmatprep.subr.bf16.mxu0 0
  %109 = vmatpush1.bf16.msra.mxu0 0
  %110 = vmatprep.subr.bf16.mxu0 0
  %111 = vmatpush1.bf16.msra.mxu0 0
  %112 = vmatprep.subr.bf16.mxu0 0
  %113 = vmatpush1.bf16.msra.mxu0 0
  %114 = vmatprep.subr.bf16.mxu0 0
  %115 = vmatpush1.bf16.msra.mxu0 0
  %116 = vmatprep.subr.bf16.mxu0 0
  %117 = vmatpush1.bf16.msra.mxu0 0
  %118 = vmatprep.subr.bf16.mxu0 0
  %119 = vmatpush1.bf16.msra.mxu0 0
  %120 = vmatprep.subr.bf16.mxu0 0
  %121 = vmatpush1.bf16.msra.mxu0 0
  %122 = vmatprep.subr.bf16.mxu0 0
  %123 = vmatpush1.bf16.msra.mxu0 0
  %124 = vmatprep.subr.bf16.mxu0 0
  %125 = vmatpush1.bf16.msra.mxu0 0
  %126 = vmatprep.subr.bf16.mxu0 0
  %127 = vmatpush1.bf16.msra.mxu0 0
  %128 = vmatprep.subr.bf16.mxu0 0
  %129 = vmatpush1.bf16.msra.mxu0 0
  %130 = vmatprep.subr.bf16.mxu0 0
  %131 = vmatpush1.bf16.msra.mxu0 0
  %132 = vmatprep.subr.bf16.mxu0 0
  %133 = vmatpush1.bf16.msra.mxu0 0
  %134 = vmatprep.subr.bf16.mxu0 0
  %135 = vmatpush1.bf16.msra.mxu0 0
  %136 = vmatprep.subr.bf16.mxu0 0
  %137 = vmatpush1.bf16.msra.mxu0 0
  %138 = vmatprep.mubr.bf16.mxu0 0
  %139 = vmatmul.mubr.bf16.gmra.mrb[0].mxu0 %v83
  %v140 = vpop.f32.mrb[0].mxu0
  %v141 = vadd.f32 0.0, %v140
  %v142 = vpop.f32.mrb[0].mxu0
  %v143 = vpop.f32.mrb[0].mxu0
  %v144 = vadd.f32 0.0, %v143
  %v145 = vpop.f32.mrb[0].mxu0
  %146 = vmatprep.mubr.bf16.mxu0 0
  %147 = vmatmul.mubr.bf16.gmra.mrb[0].mxu0 %v86
  %v148 = vpop.f32.mrb[0].mxu0
  %v149 = vadd.f32 0.0, %v148
  %v150 = vpop.f32.mrb[0].mxu0
  %v151 = vpop.f32.mrb[0].mxu0
  %v152 = vadd.f32 0.0, %v151
  %v153 = vpop.f32.mrb[0].mxu0
  %154 = vmatprep.mubr.bf16.mxu0 0
  %155 = vmatmul.mubr.bf16.gmra.mrb[0].mxu0 %v89
  %v156 = vpop.f32.mrb[0].mxu0
  %v157 = vadd.f32 0.0, %v156
  %v158 = vpop.f32.mrb[0].mxu0
  %v159 = vpop.f32.mrb[0].mxu0
  %v160 = vadd.f32 0.0, %v159
  %v161 = vpop.f32.mrb[0].mxu0
  %162 = vmatprep.mubr.bf16.mxu0 0
  %163 = vmatmul.mubr.bf16.gmra.mrb[0].mxu0 %v92
  %v164 = vpop.f32.mrb[0].mxu0
  %v165 = vadd.f32 0.0, %v164
  %v166 = vpop.f32.mrb[0].mxu0
  %v167 = vpop.f32.mrb[0].mxu0
  %v168 = vadd.f32 0.0, %v167
  %v169 = vpop.f32.mrb[0].mxu0
  %170 = vmatprep.mubr.bf16.mxu0 0
  %171 = vmatmul.mubr.bf16.gmra.mrb[0].mxu0 %v95
  %v172 = vpop.f32.mrb[0].mxu0
  %v173 = vadd.f32 0.0, %v172
  %v174 = vpop.f32.mrb[0].mxu0
  %v175 = vpop.f32.mrb[0].mxu0
  %v176 = vadd.f32 0.0, %v175
  %v177 = vpop.f32.mrb[0].mxu0
  %178 = vmatprep.mubr.bf16.mxu0 0
  %179 = vmatmul.mubr.bf16.gmra.mrb[0].mxu0 %v98
  %v180 = vpop.f32.mrb[0].mxu0
  %v181 = vadd.f32 0.0, %v180
  %v182 = vpop.f32.mrb[0].mxu0
  %v183 = vpop.f32.mrb[0].mxu0
  %v184 = vadd.f32 0.0, %v183
  %v185 = vpop.f32.mrb[0].mxu0
  %186 = vmatprep.mubr.bf16.mxu0 0
  %187 = vmatmul.mubr.bf16.gmra.mrb[0].mxu0 %v101
  %v188 = vpop.f32.mrb[0].mxu0
  %v189 = vadd.f32 0.0, %v188
  %v190 = vpop.f32.mrb[0].mxu0
  %v191 = vpop.f32.mrb[0].mxu0
  %v192 = vadd.f32 0.0, %v191
  %v193 = vpop.f32.mrb[0].mxu0
  %194 = vmatprep.mubr.bf16.mxu0 0
  %195 = vmatmul.mubr.bf16.gmra.mrb[0].mxu0 %v104
  %v196 = vpop.f32.mrb[0].mxu0
  %v197 = vadd.f32 0.0, %v196
  %v198 = vpop.f32.mrb[0].mxu0
  %v199 = vpop.f32.mrb[0].mxu0
  %v200 = vadd.f32 0.0, %v199
  %v201 = vpop.f32.mrb[0].mxu0
  %202 = vdwg.mxu0
  %v203 = vadd.f32 %v33, %v141
  %v204 = vadd.f32 %v34, %v144
  %v205 = vadd.f32 %v35, %v149
  %v206 = vadd.f32 %v36, %v152
  %v207 = vadd.f32 %v37, %v157
  %v208 = vadd.f32 %v38, %v160
  %v209 = vadd.f32 %v39, %v165
  %v210 = vadd.f32 %v40, %v168
  %v211 = vadd.f32 %v41, %v173
  %v212 = vadd.f32 %v42, %v176
  %v213 = vadd.f32 %v43, %v181
  %v214 = vadd.f32 %v44, %v184
  %v215 = vadd.f32 %v45, %v189
  %v216 = vadd.f32 %v46, %v192
  %v217 = vadd.f32 %v47, %v197
  %v218 = vadd.f32 %v48, %v200
  %vm219 = vcmask 162816
  %220 = vst.msk [vmem:[#allocation2] sm:$0xff] %vm219, %v203
  %221 = vst.msk [vmem:[#allocation2 + $0x8] sm:$0xff] %vm219, %v204
  %222 = vst.msk [vmem:[#allocation2 + $0x10] sm:$0xff] %vm219, %v205
  %223 = vst.msk [vmem:[#allocation2 + $0x18] sm:$0xff] %vm219, %v206
  %224 = vst.msk [vmem:[#allocation2 + $0x20] sm:$0xff] %vm219, %v207
  %225 = vst.msk [vmem:[#allocation2 + $0x28] sm:$0xff] %vm219, %v208
  %226 = vst.msk [vmem:[#allocation2 + $0x30] sm:$0xff] %vm219, %v209
  %227 = vst.msk [vmem:[#allocation2 + $0x38] sm:$0xff] %vm219, %v210
  %228 = vst.msk [vmem:[#allocation2 + $0x40] sm:$0xff] %vm219, %v211
  %229 = vst.msk [vmem:[#allocation2 + $0x48] sm:$0xff] %vm219, %v212
  %230 = vst.msk [vmem:[#allocation2 + $0x50] sm:$0xff] %vm219, %v213
  %231 = vst.msk [vmem:[#allocation2 + $0x58] sm:$0xff] %vm219, %v214
  %232 = vst.msk [vmem:[#allocation2 + $0x60] sm:$0xff] %vm219, %v215
  %233 = vst.msk [vmem:[#allocation2 + $0x68] sm:$0xff] %vm219, %v216
  %234 = vst.msk [vmem:[#allocation2 + $0x70] sm:$0xff] %vm219, %v217
  %235 = vst.msk [vmem:[#allocation2 + $0x78] sm:$0xff] %vm219, %v218
  // Predicated region
  $region14: #{novel_kqr_attention_forward.3} parent=0 // pred_check
    %p236 = pneg %p12
  $region15: #{novel_kqr_attention_forward.3} parent=0 // pred_check_branch
    %238 = sbr.rel (%p236) target = $region17
  $region16: #{novel_kqr_attention_forward.3} parent=0 // pred_region
    %v239 = vld [vmem:[#allocation2] sm:$0xff]
    %v240 = vld [vmem:[#allocation2 + $0x8] sm:$0xff]
    %v241 = vld [vmem:[#allocation2 + $0x10] sm:$0xff]
    %v242 = vld [vmem:[#allocation2 + $0x18] sm:$0xff]
    %v243 = vld [vmem:[#allocation2 + $0x20] sm:$0xff]
    %v244 = vld [vmem:[#allocation2 + $0x28] sm:$0xff]
    %v245 = vld [vmem:[#allocation2 + $0x30] sm:$0xff]
    %v246 = vld [vmem:[#allocation2 + $0x38] sm:$0xff]
    %v247 = vld [vmem:[#allocation2 + $0x40] sm:$0xff]
    %v248 = vld [vmem:[#allocation2 + $0x48] sm:$0xff]
    %v249 = vld [vmem:[#allocation2 + $0x50] sm:$0xff]
    %v250 = vld [vmem:[#allocation2 + $0x58] sm:$0xff]
    %v251 = vld [vmem:[#allocation2 + $0x60] sm:$0xff]
    %v252 = vld [vmem:[#allocation2 + $0x68] sm:$0xff]
    %v253 = vld [vmem:[#allocation2 + $0x70] sm:$0xff]
    %v254 = vld [vmem:[#allocation2 + $0x78] sm:$0xff]
    %255 = vst.msk [vmem:[%s2] sm:$0xff] %vm219, %v239
    %256 = vst.msk [vmem:[%s2 + $0x8] sm:$0xff] %vm219, %v240
    %257 = vst.msk [vmem:[%s2 + $0x10] sm:$0xff] %vm219, %v241
    %258 = vst.msk [vmem:[%s2 + $0x18] sm:$0xff] %vm219, %v242
    %259 = vst.msk [vmem:[%s2 + $0x20] sm:$0xff] %vm219, %v243
    %260 = vst.msk [vmem:[%s2 + $0x28] sm:$0xff] %vm219, %v244
    %261 = vst.msk [vmem:[%s2 + $0x30] sm:$0xff] %vm219, %v245
    %262 = vst.msk [vmem:[%s2 + $0x38] sm:$0xff] %vm219, %v246
    %263 = vst.msk [vmem:[%s2 + $0x40] sm:$0xff] %vm219, %v247
    %264 = vst.msk [vmem:[%s2 + $0x48] sm:$0xff] %vm219, %v248
    %265 = vst.msk [vmem:[%s2 + $0x50] sm:$0xff] %vm219, %v249
    %266 = vst.msk [vmem:[%s2 + $0x58] sm:$0xff] %vm219, %v250
    %267 = vst.msk [vmem:[%s2 + $0x60] sm:$0xff] %vm219, %v251
    %268 = vst.msk [vmem:[%s2 + $0x68] sm:$0xff] %vm219, %v252
    %269 = vst.msk [vmem:[%s2 + $0x70] sm:$0xff] %vm219, %v253
    %270 = vst.msk [vmem:[%s2 + $0x78] sm:$0xff] %vm219, %v254
  $region17: #{novel_kqr_attention_forward.3} parent=0 // pred_fallthru
    _
  // Predicated region
  $region18: #{novel_kqr_attention_forward.3} parent=0 // pred_check
    _
  $region19: #{novel_kqr_attention_forward.3} parent=0 // pred_check_branch
    %272 = sbr.rel (0) target = $region21
  $region20: #{novel_kqr_attention_forward.3} parent=0 // pred_region
    _
  $region21: #{novel_kqr_attention_forward.3} parent=0 // pred_fallthru
    _
  // Predicated region
  $region22: #{novel_kqr_attention_forward.3} parent=0 // pred_check
    _
  $region23: #{novel_kqr_attention_forward.3} parent=0 // pred_check_branch
    %274 = sbr.rel (0) target = $region25
  $region24: #{novel_kqr_attention_forward.3} parent=0 // pred_region
    _
  $region25: #{novel_kqr_attention_forward.3} parent=0 // pred_fallthru
    _

// kernel: novel_kqr_attention_forward.5
$region0: #{novel_kqr_attention_forward.5}
  #allocation0 [shape = 'u32[]', space=smem, size = 0x4, offset = 0x4, fixed_abs, tag = 'smem constant byte address 0x4 - core index']
  #allocation1 [shape = 'u32[144,128]{1,0:T(1,128)}', space=vmem, size = 0x12000, scoped, tag = 'internal scratch']
  %s0 = inlined_call_operand.vmem [shape: f32[2,16,256], index: 0, kind: input, shape index: {}]
  %s1 = inlined_call_operand.vmem [shape: f32[2,16,1], index: 1, kind: input, shape index: {}]
  %s2 = inlined_call_operand.vmem [shape: f32[2,16,256], index: 2, kind: output, shape index: {}]
  %s3 = sld [smem:[#allocation0]]
  $region41: #{novel_kqr_attention_forward.5} parent=0
    _
  %s5 = ssub.s32 1, %s3
  %s6 = scalar_select 0, %s5, %s3
  loop: start=0, step=1, limit=4
  $region2: #{novel_kqr_attention_forward.5} parent=0 // loop_pre_header
    _
  $region3: #{novel_kqr_attention_forward.5} parent=0 // loop_header
    %s8 = sphi 0, %s12
    %p9 = scmp.ge.s32.totalorder %s8, 4
    %s15 = sphi 0, %s27
    %s16 = sphi 0, %s23
    %s17 = sphi 0, %s15
    %s18 = sphi 0, %s16
    %s19 = sphi 0, %s17
    %s20 = sphi 0, %s18
    %s32 = sphi 0, %s34
    %s35 = sphi 0, %s32
    %s36 = sphi 0, %s35
    %s52 = sphi 0, %s36
    %s58 = sphi 0, %s60
    %s61 = sphi 0, %s58
    %s62 = sphi 0, %s61
    %s78 = sphi 0, %s62
    %s86 = sphi 0, %s88
    %s89 = sphi 0, %s86
    %s90 = sphi 0, %s89
    %s106 = sphi 0, %s90
  $region4: #{novel_kqr_attention_forward.5} parent=0 // loop_header_branch
    %11 = sbr.rel (%p9) target = $region8
  $region5: #{novel_kqr_attention_forward.5} parent=0 // loop_body
    %s13 = ssub.s32 %s8, 1
    %s14 = ssub.s32 %s8, 2
    %s21 = sadd.s32 1, %s16
    %p22 = scmp.ge.s32.totalorder %s21, 1
    %s23 = scalar_select %p22, 0, %s21
    %s24 = sadd.s32 1, %s15
    %s25 = scalar_select %p22, %s24, %s15
    %p26 = scmp.ge.s32.totalorder %s25, 2
    %s27 = scalar_select %p26, 0, %s25
    %s28 = ssub.s32 %s15, %s27
    %s29 = ssub.s32 %s16, %s23
    %s30 = sor.u32 %s28, %s29
    %p31 = scmp.eq.s32.totalorder %s30, 0
    %s33 = sadd.s32 %s32, 1
    %s34 = scalar_select %p31, %s32, %s33
    %p37 = pneg %p31
    %p38 = scmp.eq.s32.totalorder %s8, 1
    %p39 = por %p37, %p38
    %p40 = scmp.ne.s32.totalorder %s32, %s35
    %p41 = scmp.eq.s32.totalorder %s8, 0
    %p42 = por %p40, %p41
    %p43 = scmp.ne.s32.totalorder %s32, %s35
    %p44 = scmp.eq.s32.totalorder %s13, 1
    %p45 = por %p43, %p44
    %p46 = scmp.ne.s32.totalorder %s35, %s36
    %p47 = scmp.eq.s32.totalorder %s13, 0
    %p48 = por %p46, %p47
    %p49 = scmp.ne.s32.totalorder %s35, %s36
    %p50 = scmp.eq.s32.totalorder %s14, 1
    %p51 = por %p49, %p50
    %p53 = scmp.ne.s32.totalorder %s36, %s52
    %p54 = scmp.eq.s32.totalorder %s14, 0
    %p55 = por %p53, %p54
    %s56 = ssub.s32 %s15, %s27
    %p57 = scmp.eq.s32.totalorder %s56, 0
    %s59 = sadd.s32 %s58, 1
    %s60 = scalar_select %p57, %s58, %s59
    %p63 = pneg %p57
    %p64 = scmp.eq.s32.totalorder %s8, 1
    %p65 = por %p63, %p64
    %p66 = scmp.ne.s32.totalorder %s58, %s61
    %p67 = scmp.eq.s32.totalorder %s8, 0
    %p68 = por %p66, %p67
    %p69 = scmp.ne.s32.totalorder %s58, %s61
    %p70 = scmp.eq.s32.totalorder %s13, 1
    %p71 = por %p69, %p70
    %p72 = scmp.ne.s32.totalorder %s61, %s62
    %p73 = scmp.eq.s32.totalorder %s13, 0
    %p74 = por %p72, %p73
    %p75 = scmp.ne.s32.totalorder %s61, %s62
    %p76 = scmp.eq.s32.totalorder %s14, 1
    %p77 = por %p75, %p76
    %p79 = scmp.ne.s32.totalorder %s62, %s78
    %p80 = scmp.eq.s32.totalorder %s14, 0
    %p81 = por %p79, %p80
    %s82 = ssub.s32 %s15, %s27
    %s83 = ssub.s32 %s16, %s23
    %s84 = sor.u32 %s82, %s83
    %p85 = scmp.eq.s32.totalorder %s84, 0
    %s87 = sadd.s32 %s86, 1
    %s88 = scalar_select %p85, %s86, %s87
    %p91 = pneg %p85
    %p92 = scmp.eq.s32.totalorder %s8, 1
    %p93 = por %p91, %p92
    %p94 = scmp.ne.s32.totalorder %s86, %s89
    %p95 = scmp.eq.s32.totalorder %s8, 0
    %p96 = por %p94, %p95
    %p97 = scmp.ne.s32.totalorder %s86, %s89
    %p98 = scmp.eq.s32.totalorder %s13, 1
    %p99 = por %p97, %p98
    %p100 = scmp.ne.s32.totalorder %s89, %s90
    %p101 = scmp.eq.s32.totalorder %s13, 0
    %p102 = por %p100, %p101
    %p103 = scmp.ne.s32.totalorder %s89, %s90
    %p104 = scmp.eq.s32.totalorder %s14, 1
    %p105 = por %p103, %p104
    %p107 = scmp.ne.s32.totalorder %s90, %s106
    %p108 = scmp.eq.s32.totalorder %s14, 0
    %p109 = por %p107, %p108
    %p110 = scmp.le.s32.totalorder 1, %s8
    %p111 = scmp.lt.s32.totalorder %s8, 3
    %p112 = pnand %p110, %p111
    %p113 = pneg %p112
    // Predicated region
    $region9: #{novel_kqr_attention_forward.5} parent=5 // pred_check
      _
    $region10: #{novel_kqr_attention_forward.5} parent=5 // pred_check_branch
      %115 = sbr.rel (%p112) target = $region12
    $region11: #{novel_kqr_attention_forward.5} parent=5 // pred_region
      %s116 = ssub.s32 %s8, 1
    $region12: #{novel_kqr_attention_forward.5} parent=5 // pred_fallthru
      _
    %p117 = scmp.lt.s32.totalorder %s8, 2
    // Predicated region
    $region13: #{novel_kqr_attention_forward.5} parent=5 // pred_check
      %p118 = pneg %p117
    $region14: #{novel_kqr_attention_forward.5} parent=5 // pred_check_branch
      %120 = sbr.rel (%p118) target = $region16
    $region15: #{novel_kqr_attention_forward.5} parent=5 // pred_region
      // Predicated region
      $region17: #{novel_kqr_attention_forward.5} parent=15 // pred_check
        %p121 = pneg %p42
      $region18: #{novel_kqr_attention_forward.5} parent=15 // pred_check_branch
        %123 = sbr.rel (%p121) target = $region20
      $region19: #{novel_kqr_attention_forward.5} parent=15 // pred_region
        %s124 = smul.u32 2, %s16
        %p125 = scmp.lt.s32.totalorder %s15, 1
        %s126 = scalar_select %p125, %s15, 1
        %p127 = scmp.lt.s32.totalorder %s124, 1
        %s128 = scalar_select %p127, %s124, 1
        %s129 = smul.addr %s126, 4
        %s130 = sadd.s32 %s128, %s129
        %s131 = smul.addr %s130, 8
        %s132 = scalar_lea.vmem %s0, %s131
        %s133 = smul.u32 2, %s16
      $region20: #{novel_kqr_attention_forward.5} parent=15 // pred_fallthru
        _
      // Predicated region
      $region21: #{novel_kqr_attention_forward.5} parent=15 // pred_check
        %p134 = pneg %p68
      $region22: #{novel_kqr_attention_forward.5} parent=15 // pred_check_branch
        %136 = sbr.rel (%p134) target = $region24
      $region23: #{novel_kqr_attention_forward.5} parent=15 // pred_region
        %p137 = scmp.lt.s32.totalorder %s15, 1
        %s138 = scalar_select %p137, %s15, 1
        %s139 = smul.addr %s138, 2
        %s140 = smul.addr %s139, 8
        %s141 = scalar_lea.vmem %s1, %s140
      $region24: #{novel_kqr_attention_forward.5} parent=15 // pred_fallthru
        _
    $region16: #{novel_kqr_attention_forward.5} parent=5 // pred_fallthru
      _
    %p142 = scmp.le.s32.totalorder 1, %s8
    %p143 = scmp.lt.s32.totalorder %s8, 3
    %p144 = pnand %p142, %p143
    %p145 = pneg %p144
    // Predicated region
    $region25: #{novel_kqr_attention_forward.5} parent=5 // pred_check
      _
    $region26: #{novel_kqr_attention_forward.5} parent=5 // pred_check_branch
      %147 = sbr.rel (%p144) target = $region28
    $region27: #{novel_kqr_attention_forward.5} parent=5 // pred_region
      %s148 = ssub.s32 %s8, 1
      %s149 = smul.u32 2, %s18
      %p150 = scmp.lt.s32.totalorder %s17, 1
      %s151 = scalar_select %p150, %s17, 1
      %p152 = scmp.lt.s32.totalorder %s149, 1
      %s153 = scalar_select %p152, %s149, 1
      %s154 = smul.addr %s151, 4
      %s155 = sadd.s32 %s153, %s154
      %s156 = smul.addr %s155, 8
      %s157 = scalar_lea.vmem %s0, %s156
      %p158 = pneg %p48
      %p159 = pneg %p45
      %p160 = scmp.lt.s32.totalorder %s17, 1
      %s161 = scalar_select %p160, %s17, 1
      %s162 = smul.addr %s161, 2
      %s163 = smul.addr %s162, 8
      %s164 = scalar_lea.vmem %s1, %s163
      %p165 = pneg %p74
      %p166 = pneg %p71
      %p167 = pneg %p102
      %p168 = pneg %p99
      %s169 = smul.u32 2, %s18
      %p170 = scmp.lt.s32.totalorder %s17, 1
      %s171 = scalar_select %p170, %s17, 1
      %p172 = scmp.lt.s32.totalorder %s169, 1
      %s173 = scalar_select %p172, %s169, 1
      %s174 = smul.addr %s171, 4
      %s175 = sadd.s32 %s173, %s174
      %s176 = smul.addr %s175, 8
      %s177 = scalar_lea.vmem %s2, %s176
      %s178 = smul.u32 2, %s18
      %p179 = scmp.lt.s32.totalorder %s17, 1
      %s180 = scalar_select %p179, %s17, 1
      %p181 = scmp.lt.s32.totalorder %s178, 1
      %s182 = scalar_select %p181, %s178, 1
      %s183 = smul.addr %s180, 4
      %s184 = sadd.s32 %s182, %s183
      %s185 = smul.addr %s184, 8
      %s186 = scalar_lea.vmem %s0, %s185
      %s187 = smul.u32 2, %s18
      %p188 = scmp.lt.s32.totalorder %s17, 1
      %s189 = scalar_select %p188, %s17, 1
      %s190 = smul.addr %s189, 2
      %s191 = smul.addr %s190, 8
      %s192 = scalar_lea.vmem %s1, %s191
      %s193 = smul.u32 2, %s18
      %p194 = scmp.lt.s32.totalorder %s17, 1
      %s195 = scalar_select %p194, %s17, 1
      %p196 = scmp.lt.s32.totalorder %s193, 1
      %s197 = scalar_select %p196, %s193, 1
      %s198 = smul.addr %s195, 4
      %s199 = sadd.s32 %s197, %s198
      %s200 = smul.addr %s199, 8
      %s201 = scalar_lea.vmem %s2, %s200
      %s202 = smul.u32 2, %s18
      %v203 = vld [vmem:[%s186] sm:$0xff]
      %v204 = vld [vmem:[%s186 + $0x8] sm:$0xff]
      %v205 = vld [vmem:[%s186 + $0x10] sm:$0xff]
      %v206 = vld [vmem:[%s186 + $0x18] sm:$0xff]
      %v207 = vld [vmem:[%s192] sm:$0xff]
      %v208 = vld [vmem:[%s192 + $0x8] sm:$0xff]
      %210 = vset.pattern.permute.xlu0 0
      %211 = vperm.xlu0 %210, %v207
      %v212 = vpop.permute.xlu0 %211
      %215 = vset.pattern.permute.xlu0 0
      %216 = vperm.xlu0 %215, %v208
      %v217 = vpop.permute.xlu0 %216
      %v219 = vadd.f32 %v203, %v212
      %v220 = vadd.f32 %v204, %v212
      %v221 = vadd.f32 %v205, %v217
      %v222 = vadd.f32 %v206, %v217
      %223 = vst [vmem:[%s201] sm:$0xff] %v219
      %224 = vst [vmem:[%s201 + $0x8] sm:$0xff] %v220
      %225 = vst [vmem:[%s201 + $0x10] sm:$0xff] %v221
      %226 = vst [vmem:[%s201 + $0x18] sm:$0xff] %v222
      %s227 = smul.u32 2, %s18
      %p228 = scmp.lt.s32.totalorder %s17, 1
      %s229 = scalar_select %p228, %s17, 1
      %p230 = scmp.lt.s32.totalorder %s227, 1
      %s231 = scalar_select %p230, %s227, 1
      %s232 = smul.addr %s229, 4
      %s233 = sadd.s32 %s231, %s232
      %s234 = smul.addr %s233, 8
      %s235 = scalar_lea.vmem %s2, %s234
      // Predicated region
      $region29: #{novel_kqr_attention_forward.5} parent=27 // pred_check
        %p236 = pneg %p99
      $region30: #{novel_kqr_attention_forward.5} parent=27 // pred_check_branch
        %238 = sbr.rel (%p236) target = $region32
      $region31: #{novel_kqr_attention_forward.5} parent=27 // pred_region
        %s239 = smul.u32 2, %s18
      $region32: #{novel_kqr_attention_forward.5} parent=27 // pred_fallthru
        _
    $region28: #{novel_kqr_attention_forward.5} parent=5 // pred_fallthru
      _
    %p240 = scmp.le.s32.totalorder 2, %s8
    // Predicated region
    $region33: #{novel_kqr_attention_forward.5} parent=5 // pred_check
      %p241 = pneg %p240
    $region34: #{novel_kqr_attention_forward.5} parent=5 // pred_check_branch
      %243 = sbr.rel (%p241) target = $region36
    $region35: #{novel_kqr_attention_forward.5} parent=5 // pred_region
      %s244 = ssub.s32 %s8, 2
      // Predicated region
      $region37: #{novel_kqr_attention_forward.5} parent=35 // pred_check
        %p245 = pneg %p105
      $region38: #{novel_kqr_attention_forward.5} parent=35 // pred_check_branch
        %247 = sbr.rel (%p245) target = $region40
      $region39: #{novel_kqr_attention_forward.5} parent=35 // pred_region
        %s248 = smul.u32 2, %s20
        %p249 = scmp.lt.s32.totalorder %s19, 1
        %s250 = scalar_select %p249, %s19, 1
        %p251 = scmp.lt.s32.totalorder %s248, 1
        %s252 = scalar_select %p251, %s248, 1
        %s253 = smul.addr %s250, 4
        %s254 = sadd.s32 %s252, %s253
        %s255 = smul.addr %s254, 8
        %s256 = scalar_lea.vmem %s2, %s255
      $region40: #{novel_kqr_attention_forward.5} parent=35 // pred_fallthru
        _
    $region36: #{novel_kqr_attention_forward.5} parent=5 // pred_fallthru
      _
  $region6: #{novel_kqr_attention_forward.5} parent=0 // loop_footer
    %s12 = sadd.s32 1, %s8
  $region7: #{novel_kqr_attention_forward.5} parent=0 // loop_footer_branch
    %7 = sbr.rel target = $region3
  $region8: #{novel_kqr_attention_forward.5} parent=0 // loop_exit
    _

// kernel: novel_kqr_attention_forward.4
$region0: #{novel_kqr_attention_forward.4}
  #allocation0 [shape = 'u32[]', space=smem, size = 0x4, offset = 0x4, fixed_abs, tag = 'smem constant byte address 0x4 - core index']
  #allocation1 [shape = 'u32[144,128]{1,0:T(1,128)}', space=vmem, size = 0x12000, scoped, tag = 'internal scratch']
  %s0 = inlined_call_operand.vmem [shape: f32[2,64,20], index: 0, kind: input, shape index: {}]
  %s1 = inlined_call_operand.vmem [shape: f32[4,16], index: 1, kind: input, shape index: {}]
  %s2 = inlined_call_operand.vmem [shape: f32[16,16], index: 2, kind: input, shape index: {}]
  %s3 = inlined_call_operand.vmem [shape: f32[1,16], index: 3, kind: input, shape index: {}]
  %s4 = inlined_call_operand.vmem [shape: f32[2,1,16], index: 4, kind: output, shape index: {}]
  %s5 = sld [smem:[#allocation0]]
  $region49: #{novel_kqr_attention_forward.4} parent=0
    _
  %s7 = ssub.s32 1, %s5
  %s8 = scalar_select 0, %s7, %s5
  loop: start=0, step=1, limit=4
  $region2: #{novel_kqr_attention_forward.4} parent=0 // loop_pre_header
    _
  $region3: #{novel_kqr_attention_forward.4} parent=0 // loop_header
    %s10 = sphi 0, %s14
    %p11 = scmp.ge.s32.totalorder %s10, 4
    %s20 = sphi 0, %s22
    %s23 = sphi 0, %s20
    %s24 = sphi 0, %s23
    %s40 = sphi 0, %s24
    %s44 = sphi 0, %s44
    %s46 = sphi 0, %s44
    %s47 = sphi 0, %s46
    %s61 = sphi 0, %s47
    %s65 = sphi 0, %s65
    %s67 = sphi 0, %s65
    %s68 = sphi 0, %s67
    %s82 = sphi 0, %s68
    %s86 = sphi 0, %s86
    %s88 = sphi 0, %s86
    %s89 = sphi 0, %s88
    %s103 = sphi 0, %s89
    %s109 = sphi 0, %s111
    %s112 = sphi 0, %s109
    %s113 = sphi 0, %s112
    %s129 = sphi 0, %s113
  $region4: #{novel_kqr_attention_forward.4} parent=0 // loop_header_branch
    %13 = sbr.rel (%p11) target = $region8
  $region5: #{novel_kqr_attention_forward.4} parent=0 // loop_body
    %s15 = ssub.s32 %s10, 1
    %s16 = ssub.s32 %s10, 2
    %s17 = sadd.s32 %s10, 1
    %s18 = ssub.s32 %s10, %s17
    %p19 = scmp.eq.s32.totalorder %s18, 0
    %s21 = sadd.s32 %s20, 1
    %s22 = scalar_select %p19, %s20, %s21
    %p25 = pneg %p19
    %p26 = scmp.eq.s32.totalorder %s10, 1
    %p27 = por %p25, %p26
    %p28 = scmp.ne.s32.totalorder %s20, %s23
    %p29 = scmp.eq.s32.totalorder %s10, 0
    %p30 = por %p28, %p29
    %p31 = scmp.ne.s32.totalorder %s20, %s23
    %p32 = scmp.eq.s32.totalorder %s15, 1
    %p33 = por %p31, %p32
    %p34 = scmp.ne.s32.totalorder %s23, %s24
    %p35 = scmp.eq.s32.totalorder %s15, 0
    %p36 = por %p34, %p35
    %p37 = scmp.ne.s32.totalorder %s23, %s24
    %p38 = scmp.eq.s32.totalorder %s16, 1
    %p39 = por %p37, %p38
    %p41 = scmp.ne.s32.totalorder %s24, %s40
    %p42 = scmp.eq.s32.totalorder %s16, 0
    %p43 = por %p41, %p42
    %s45 = sadd.s32 %s44, 1
    %p48 = scmp.eq.s32.totalorder %s10, 1
    %p49 = scmp.ne.s32.totalorder %s44, %s46
    %p50 = scmp.eq.s32.totalorder %s10, 0
    %p51 = por %p49, %p50
    %p52 = scmp.ne.s32.totalorder %s44, %s46
    %p53 = scmp.eq.s32.totalorder %s15, 1
    %p54 = por %p52, %p53
    %p55 = scmp.ne.s32.totalorder %s46, %s47
    %p56 = scmp.eq.s32.totalorder %s15, 0
    %p57 = por %p55, %p56
    %p58 = scmp.ne.s32.totalorder %s46, %s47
    %p59 = scmp.eq.s32.totalorder %s16, 1
    %p60 = por %p58, %p59
    %p62 = scmp.ne.s32.totalorder %s47, %s61
    %p63 = scmp.eq.s32.totalorder %s16, 0
    %p64 = por %p62, %p63
    %s66 = sadd.s32 %s65, 1
    %p69 = scmp.eq.s32.totalorder %s10, 1
    %p70 = scmp.ne.s32.totalorder %s65, %s67
    %p71 = scmp.eq.s32.totalorder %s10, 0
    %p72 = por %p70, %p71
    %p73 = scmp.ne.s32.totalorder %s65, %s67
    %p74 = scmp.eq.s32.totalorder %s15, 1
    %p75 = por %p73, %p74
    %p76 = scmp.ne.s32.totalorder %s67, %s68
    %p77 = scmp.eq.s32.totalorder %s15, 0
    %p78 = por %p76, %p77
    %p79 = scmp.ne.s32.totalorder %s67, %s68
    %p80 = scmp.eq.s32.totalorder %s16, 1
    %p81 = por %p79, %p80
    %p83 = scmp.ne.s32.totalorder %s68, %s82
    %p84 = scmp.eq.s32.totalorder %s16, 0
    %p85 = por %p83, %p84
    %s87 = sadd.s32 %s86, 1
    %p90 = scmp.eq.s32.totalorder %s10, 1
    %p91 = scmp.ne.s32.totalorder %s86, %s88
    %p92 = scmp.eq.s32.totalorder %s10, 0
    %p93 = por %p91, %p92
    %p94 = scmp.ne.s32.totalorder %s86, %s88
    %p95 = scmp.eq.s32.totalorder %s15, 1
    %p96 = por %p94, %p95
    %p97 = scmp.ne.s32.totalorder %s88, %s89
    %p98 = scmp.eq.s32.totalorder %s15, 0
    %p99 = por %p97, %p98
    %p100 = scmp.ne.s32.totalorder %s88, %s89
    %p101 = scmp.eq.s32.totalorder %s16, 1
    %p102 = por %p100, %p101
    %p104 = scmp.ne.s32.totalorder %s89, %s103
    %p105 = scmp.eq.s32.totalorder %s16, 0
    %p106 = por %p104, %p105
    %s107 = ssub.s32 %s10, %s17
    %p108 = scmp.eq.s32.totalorder %s107, 0
    %s110 = sadd.s32 %s109, 1
    %s111 = scalar_select %p108, %s109, %s110
    %p114 = pneg %p108
    %p115 = scmp.eq.s32.totalorder %s10, 1
    %p116 = por %p114, %p115
    %p117 = scmp.ne.s32.totalorder %s109, %s112
    %p118 = scmp.eq.s32.totalorder %s10, 0
    %p119 = por %p117, %p118
    %p120 = scmp.ne.s32.totalorder %s109, %s112
    %p121 = scmp.eq.s32.totalorder %s15, 1
    %p122 = por %p120, %p121
    %p123 = scmp.ne.s32.totalorder %s112, %s113
    %p124 = scmp.eq.s32.totalorder %s15, 0
    %p125 = por %p123, %p124
    %p126 = scmp.ne.s32.totalorder %s112, %s113
    %p127 = scmp.eq.s32.totalorder %s16, 1
    %p128 = por %p126, %p127
    %p130 = scmp.ne.s32.totalorder %s113, %s129
    %p131 = scmp.eq.s32.totalorder %s16, 0
    %p132 = por %p130, %p131
    %p133 = scmp.le.s32.totalorder 1, %s10
    %p134 = scmp.lt.s32.totalorder %s10, 3
    %p135 = pnand %p133, %p134
    %p136 = pneg %p135
    // Predicated region
    $region9: #{novel_kqr_attention_forward.4} parent=5 // pred_check
      _
    $region10: #{novel_kqr_attention_forward.4} parent=5 // pred_check_branch
      %138 = sbr.rel (%p135) target = $region12
    $region11: #{novel_kqr_attention_forward.4} parent=5 // pred_region
      %s139 = ssub.s32 %s10, 1
      // Predicated region
      $region13: #{novel_kqr_attention_forward.4} parent=11 // pred_check
        %p140 = pneg %p57
      $region14: #{novel_kqr_attention_forward.4} parent=11 // pred_check_branch
        %142 = sbr.rel (%p140) target = $region16
      $region15: #{novel_kqr_attention_forward.4} parent=11 // pred_region
        _
      $region16: #{novel_kqr_attention_forward.4} parent=11 // pred_fallthru
        _
      // Predicated region
      $region17: #{novel_kqr_attention_forward.4} parent=11 // pred_check
        %p143 = pneg %p78
      $region18: #{novel_kqr_attention_forward.4} parent=11 // pred_check_branch
        %145 = sbr.rel (%p143) target = $region20
      $region19: #{novel_kqr_attention_forward.4} parent=11 // pred_region
        _
      $region20: #{novel_kqr_attention_forward.4} parent=11 // pred_fallthru
        _
      // Predicated region
      $region21: #{novel_kqr_attention_forward.4} parent=11 // pred_check
        %p146 = pneg %p99
      $region22: #{novel_kqr_attention_forward.4} parent=11 // pred_check_branch
        %148 = sbr.rel (%p146) target = $region24
      $region23: #{novel_kqr_attention_forward.4} parent=11 // pred_region
        _
      $region24: #{novel_kqr_attention_forward.4} parent=11 // pred_fallthru
        _
    $region12: #{novel_kqr_attention_forward.4} parent=5 // pred_fallthru
      _
    %p149 = scmp.lt.s32.totalorder %s10, 2
    // Predicated region
    $region25: #{novel_kqr_attention_forward.4} parent=5 // pred_check
      %p150 = pneg %p149
    $region26: #{novel_kqr_attention_forward.4} parent=5 // pred_check_branch
      %152 = sbr.rel (%p150) target = $region28
    $region27: #{novel_kqr_attention_forward.4} parent=5 // pred_region
      // Predicated region
      $region29: #{novel_kqr_attention_forward.4} parent=27 // pred_check
        %p153 = pneg %p30
      $region30: #{novel_kqr_attention_forward.4} parent=27 // pred_check_branch
        %155 = sbr.rel (%p153) target = $region32
      $region31: #{novel_kqr_attention_forward.4} parent=27 // pred_region
        %p156 = scmp.lt.s32.totalorder %s10, 1
        %s157 = scalar_select %p156, %s10, 1
        %s158 = smul.addr %s157, 8
        %s159 = smul.addr %s158, 8
        %s160 = scalar_lea.vmem %s0, %s159
      $region32: #{novel_kqr_attention_forward.4} parent=27 // pred_fallthru
        _
    $region28: #{novel_kqr_attention_forward.4} parent=5 // pred_fallthru
      _
    %p161 = scmp.le.s32.totalorder 1, %s10
    %p162 = scmp.lt.s32.totalorder %s10, 3
    %p163 = pnand %p161, %p162
    %p164 = pneg %p163
    // Predicated region
    $region33: #{novel_kqr_attention_forward.4} parent=5 // pred_check
      _
    $region34: #{novel_kqr_attention_forward.4} parent=5 // pred_check_branch
      %166 = sbr.rel (%p163) target = $region36
    $region35: #{novel_kqr_attention_forward.4} parent=5 // pred_region
      %s167 = ssub.s32 %s10, 1
      %p168 = scmp.lt.s32.totalorder %s15, 1
      %s169 = scalar_select %p168, %s15, 1
      %s170 = smul.addr %s169, 8
      %s171 = smul.addr %s170, 8
      %s172 = scalar_lea.vmem %s0, %s171
      %p173 = pneg %p36
      %p174 = pneg %p33
      %p175 = pneg %p57
      %p176 = pneg %p54
      %p177 = pneg %p78
      %p178 = pneg %p75
      %p179 = pneg %p99
      %p180 = pneg %p96
      %p181 = pneg %p125
      %p182 = pneg %p122
      %p183 = scmp.lt.s32.totalorder %s15, 1
      %s184 = scalar_select %p183, %s15, 1
      %s185 = scalar_lea.vmem %s4, %s184
      %p186 = scmp.lt.s32.totalorder %s15, 1
      %s187 = scalar_select %p186, %s15, 1
      %s188 = smul.addr %s187, 8
      %s189 = smul.addr %s188, 8
      %s190 = scalar_lea.vmem %s0, %s189
      %p191 = scmp.lt.s32.totalorder %s15, 1
      %s192 = scalar_select %p191, %s15, 1
      %s193 = scalar_lea.vmem %s4, %s192
      %v194 = vld [vmem:[%s190] sm:$0xff]
      %v195 = vld [vmem:[%s190 + $0x8] sm:$0xff]
      %v196 = vld [vmem:[%s190 + $0x10] sm:$0xff]
      %v197 = vld [vmem:[%s190 + $0x18] sm:$0xff]
      %v198 = vld [vmem:[%s190 + $0x20] sm:$0xff]
      %v199 = vld [vmem:[%s190 + $0x28] sm:$0xff]
      %v200 = vld [vmem:[%s190 + $0x30] sm:$0xff]
      %v201 = vld [vmem:[%s190 + $0x38] sm:$0xff]
      %vm202 = vcmask 162944
      %v203 = vsel %vm202, %v194, -inf
      %v204 = vsel %vm202, %v195, -inf
      %v205 = vsel %vm202, %v196, -inf
      %v206 = vsel %vm202, %v197, -inf
      %v207 = vsel %vm202, %v198, -inf
      %v208 = vmax.f32 %v203, %v207
      %v209 = vsel %vm202, %v199, -inf
      %v210 = vmax.f32 %v204, %v209
      %v211 = vsel %vm202, %v200, -inf
      %v212 = vmax.f32 %v205, %v211
      %v213 = vsel %vm202, %v201, -inf
      %v214 = vmax.f32 %v206, %v213
      %v215 = vmax.f32 %v208, %v210
      %v216 = vmax.f32 %v212, %v214
      %v217 = vmax.f32 %v215, %v216
      %v218 = vrot.slane %v217, 4
      %v219 = vmax.f32 %v217, %v218
      %v220 = vrot.slane %v219, 2
      %v221 = vmax.f32 %v219, %v220
      %v222 = vrot.slane %v221, 1
      %v223 = vmax.f32 %v221, %v222
      %v224 = vsub.f32 %v194, %v223
      %v225 = vsub.f32 %v195, %v223
      %v226 = vsub.f32 %v196, %v223
      %v227 = vsub.f32 %v197, %v223
      %v228 = vsub.f32 %v198, %v223
      %v229 = vsub.f32 %v199, %v223
      %v230 = vsub.f32 %v200, %v223
      %v231 = vsub.f32 %v201, %v223
      %v232 = vmul.f32 %v224, 1.442695
      %v233 = vpow.pop %v232
      %v234 = vmul.f32 %v225, 1.442695
      %v235 = vpow.pop %v234
      %v236 = vmul.f32 %v226, 1.442695
      %v237 = vpow.pop %v236
      %v238 = vmul.f32 %v227, 1.442695
      %v239 = vpow.pop %v238
      %v240 = vmul.f32 %v228, 1.442695
      %v241 = vpow.pop %v240
      %v242 = vmul.f32 %v229, 1.442695
      %v243 = vpow.pop %v242
      %v244 = vmul.f32 %v230, 1.442695
      %v245 = vpow.pop %v244
      %v246 = vmul.f32 %v231, 1.442695
      %v247 = vpow.pop %v246
      %v248 = vsel %vm202, %v233, 0.0
      %v249 = vsel %vm202, %v235, 0.0
      %v250 = vadd.f32 %v248, %v249
      %v251 = vsel %vm202, %v237, 0.0
      %v252 = vadd.f32 %v250, %v251
      %v253 = vsel %vm202, %v239, 0.0
      %v254 = vadd.f32 %v252, %v253
      %v255 = vsel %vm202, %v241, 0.0
      %v256 = vadd.f32 %v254, %v255
      %v257 = vsel %vm202, %v243, 0.0
      %v258 = vadd.f32 %v256, %v257
      %v259 = vsel %vm202, %v245, 0.0
      %v260 = vadd.f32 %v258, %v259
      %v261 = vsel %vm202, %v247, 0.0
      %v262 = vadd.f32 %v260, %v261
      %v263 = vrot.slane %v262, 4
      %v264 = vadd.f32 %v262, %v263
      %v265 = vrot.slane %v264, 2
      %v266 = vadd.f32 %v264, %v265
      %v267 = vrot.slane %v266, 1
      %v268 = vadd.f32 %v266, %v267
      %v269 = vrcp.pop %v268
      %v270 = vmul.f32 %v233, %v269
      %v271 = vmul.f32 %v235, %v269
      %v272 = vmul.f32 %v237, %v269
      %v273 = vmul.f32 %v239, %v269
      %v274 = vmul.f32 %v241, %v269
      %v275 = vmul.f32 %v243, %v269
      %v276 = vmul.f32 %v245, %v269
      %v277 = vmul.f32 %v247, %v269
      %v278 = vld [vmem:[%s1] sm:$0xf]
      %287 = vrot.lane.b32.xlu0 %v270, 112
      %v288 = vpop.permute.xlu0 %287
      %289 = vrot.lane.b32.xlu0 %v271, 112
      %v290 = vpop.permute.xlu0 %289
      %291 = vrot.lane.b32.xlu0 %v272, 112
      %v292 = vpop.permute.xlu0 %291
      %293 = vrot.lane.b32.xlu0 %v273, 112
      %v294 = vpop.permute.xlu0 %293
      %295 = vrot.lane.b32.xlu0 %v274, 112
      %v296 = vpop.permute.xlu0 %295
      %297 = vrot.lane.b32.xlu0 %v275, 112
      %v298 = vpop.permute.xlu0 %297
      %299 = vrot.lane.b32.xlu0 %v276, 112
      %v300 = vpop.permute.xlu0 %299
      %301 = vrot.lane.b32.xlu0 %v277, 112
      %v302 = vpop.permute.xlu0 %301
      %vm303 = vcmask 31744
      %v304 = vsel %vm303, %v288, 0
      %v306 = vsel %vm303, %v290, 0
      %v308 = vsel %vm303, %v292, 0
      %v310 = vsel %vm303, %v294, 0
      %v312 = vsel %vm303, %v296, 0
      %v314 = vsel %vm303, %v298, 0
      %v316 = vsel %vm303, %v300, 0
      %v318 = vsel %vm303, %v302, 0
      %vm320 = vcmask 1043456
      %v322 = vsel %vm320, %v278, 0
      %324 = vmatprep.subr.mxu0 0.0
      %325 = vmatpush1.msra.mxu0 %v322
      %326 = vmatprep.subr.mxu0 0.0
      %327 = vmatpush1.msra.mxu0 0.0
      %328 = vmatprep.subr.mxu0 0.0
      %329 = vmatpush1.msra.mxu0 0.0
      %330 = vmatprep.subr.mxu0 0.0
      %331 = vmatpush1.msra.mxu0 0.0
      %332 = vmatprep.subr.mxu0 0.0
      %333 = vmatpush1.msra.mxu0 0.0
      %334 = vmatprep.subr.mxu0 0.0
      %335 = vmatpush1.msra.mxu0 0.0
      %336 = vmatprep.subr.mxu0 0.0
      %337 = vmatpush1.msra.mxu0 0.0
      %338 = vmatprep.subr.mxu0 0.0
      %339 = vmatpush1.msra.mxu0 0.0
      %340 = vmatprep.subr.mxu0 0.0
      %341 = vmatpush1.msra.mxu0 0.0
      %342 = vmatprep.subr.mxu0 0.0
      %343 = vmatpush1.msra.mxu0 0.0
      %344 = vmatprep.subr.mxu0 0.0
      %345 = vmatpush1.msra.mxu0 0.0
      %346 = vmatprep.subr.mxu0 0.0
      %347 = vmatpush1.msra.mxu0 0.0
      %348 = vmatprep.subr.mxu0 0.0
      %349 = vmatpush1.msra.mxu0 0.0
      %350 = vmatprep.subr.mxu0 0.0
      %351 = vmatpush1.msra.mxu0 0.0
      %352 = vmatprep.subr.mxu0 0.0
      %353 = vmatpush1.msra.mxu0 0.0
      %354 = vmatprep.subr.mxu0 0.0
      %355 = vmatpush1.msra.mxu0 0.0
      %356 = vmatprep.subr.mxu0 0.0
      %357 = vmatpush1.msra.mxu0 0.0
      %358 = vmatprep.subr.mxu0 0.0
      %359 = vmatpush1.msra.mxu0 0.0
      %360 = vmatprep.subr.mxu0 0.0
      %361 = vmatpush1.msra.mxu0 0.0
      %362 = vmatprep.subr.mxu0 0.0
      %363 = vmatpush1.msra.mxu0 0.0
      %364 = vmatprep.subr.mxu0 0.0
      %365 = vmatpush1.msra.mxu0 0.0
      %366 = vmatprep.subr.mxu0 0.0
      %367 = vmatpush1.msra.mxu0 0.0
      %368 = vmatprep.subr.mxu0 0.0
      %369 = vmatpush1.msra.mxu0 0.0
      %370 = vmatprep.subr.mxu0 0.0
      %371 = vmatpush1.msra.mxu0 0.0
      %372 = vmatprep.subr.mxu0 0.0
      %373 = vmatpush1.msra.mxu0 0.0
      %374 = vmatprep.subr.mxu0 0.0
      %375 = vmatpush1.msra.mxu0 0.0
      %376 = vmatprep.subr.mxu0 0.0
      %377 = vmatpush1.msra.mxu0 0.0
      %378 = vmatprep.subr.mxu0 0.0
      %379 = vmatpush1.msra.mxu0 0.0
      %380 = vmatprep.subr.mxu0 0.0
      %381 = vmatpush1.msra.mxu0 0.0
      %382 = vmatprep.subr.mxu0 0.0
      %383 = vmatpush1.msra.mxu0 0.0
      %384 = vmatprep.subr.mxu0 0.0
      %385 = vmatpush1.msra.mxu0 0.0
      %386 = vmatprep.subr.mxu0 0.0
      %387 = vmatpush1.msra.mxu0 0.0
      %388 = vmatprep.mubr.f32.mxu0 0.0
      %389 = vmatmul.mubr.f32.gmra.mrb[0].mxu0 %v304
      %v390 = vpop.f32.mrb[0].mxu0
      %v391 = vadd.f32 0.0, %v390
      %v392 = vpop.f32.mrb[0].mxu0
      %393 = vmatprep.mubr.f32.mxu0 0.0
      %394 = vmatmul.mubr.f32.gmra.mrb[0].mxu0 %v306
      %v395 = vpop.f32.mrb[0].mxu0
      %v396 = vadd.f32 0.0, %v395
      %v397 = vpop.f32.mrb[0].mxu0
      %398 = vmatprep.mubr.f32.mxu0 0.0
      %399 = vmatmul.mubr.f32.gmra.mrb[0].mxu0 %v308
      %v400 = vpop.f32.mrb[0].mxu0
      %v401 = vadd.f32 0.0, %v400
      %v402 = vpop.f32.mrb[0].mxu0
      %403 = vmatprep.mubr.f32.mxu0 0.0
      %404 = vmatmul.mubr.f32.gmra.mrb[0].mxu0 %v310
      %v405 = vpop.f32.mrb[0].mxu0
      %v406 = vadd.f32 0.0, %v405
      %v407 = vpop.f32.mrb[0].mxu0
      %408 = vmatprep.mubr.f32.mxu0 0.0
      %409 = vmatmul.mubr.f32.gmra.mrb[0].mxu0 %v312
      %v410 = vpop.f32.mrb[0].mxu0
      %v411 = vadd.f32 0.0, %v410
      %v412 = vpop.f32.mrb[0].mxu0
      %413 = vmatprep.mubr.f32.mxu0 0.0
      %414 = vmatmul.mubr.f32.gmra.mrb[0].mxu0 %v314
      %v415 = vpop.f32.mrb[0].mxu0
      %v416 = vadd.f32 0.0, %v415
      %v417 = vpop.f32.mrb[0].mxu0
      %418 = vmatprep.mubr.f32.mxu0 0.0
      %419 = vmatmul.mubr.f32.gmra.mrb[0].mxu0 %v316
      %v420 = vpop.f32.mrb[0].mxu0
      %v421 = vadd.f32 0.0, %v420
      %v422 = vpop.f32.mrb[0].mxu0
      %423 = vmatprep.mubr.f32.mxu0 0.0
      %424 = vmatmul.mubr.f32.gmra.mrb[0].mxu0 %v318
      %v425 = vpop.f32.mrb[0].mxu0
      %v426 = vadd.f32 0.0, %v425
      %v427 = vpop.f32.mrb[0].mxu0
      %428 = vdwg.mxu0
      %v429 = vmul.f32 %v391, %v194
      %v430 = vmul.f32 %v396, %v195
      %v431 = vmul.f32 %v401, %v196
      %v432 = vmul.f32 %v406, %v197
      %v433 = vmul.f32 %v411, %v198
      %v434 = vmul.f32 %v416, %v199
      %v435 = vmul.f32 %v421, %v200
      %v436 = vmul.f32 %v426, %v201
      %vm437 = vcmask 130048
      %v438 = vsel %vm437, %v429, 0.0
      %v439 = vsel %vm437, %v430, 0.0
      %v440 = vadd.f32 %v438, %v439
      %v441 = vsel %vm437, %v431, 0.0
      %v442 = vadd.f32 %v440, %v441
      %v443 = vsel %vm437, %v432, 0.0
      %v444 = vadd.f32 %v442, %v443
      %v445 = vsel %vm437, %v433, 0.0
      %v446 = vadd.f32 %v444, %v445
      %v447 = vsel %vm437, %v434, 0.0
      %v448 = vadd.f32 %v446, %v447
      %v449 = vsel %vm437, %v435, 0.0
      %v450 = vadd.f32 %v448, %v449
      %v451 = vsel %vm437, %v436, 0.0
      %v452 = vadd.f32 %v450, %v451
      %v453 = vrot.slane %v452, 4
      %v454 = vadd.f32 %v452, %v453
      %v455 = vrot.slane %v454, 2
      %v456 = vadd.f32 %v454, %v455
      %v457 = vrot.slane %v456, 1
      %v458 = vadd.f32 %v456, %v457
      %v459 = vld [vmem:[%s2] sm:$0xff]
      %v460 = vld [vmem:[%s2 + $0x8] sm:$0xff]
      %v461 = vld [vmem:[%s3] sm:$0x1]
      %v463 = vsel %vm437, %v458, 0
      %465 = vmatprep.subr.mxu0 0.0
      %466 = vmatpush1.msra.mxu0 %v459
      %467 = vmatprep.subr.mxu0 0.0
      %468 = vmatpush1.msra.mxu0 %v460
      %469 = vmatprep.subr.mxu0 0.0
      %470 = vmatpush1.msra.mxu0 0.0
      %471 = vmatprep.subr.mxu0 0.0
      %472 = vmatpush1.msra.mxu0 0.0
      %473 = vmatprep.subr.mxu0 0.0
      %474 = vmatpush1.msra.mxu0 0.0
      %475 = vmatprep.subr.mxu0 0.0
      %476 = vmatpush1.msra.mxu0 0.0
      %477 = vmatprep.subr.mxu0 0.0
      %478 = vmatpush1.msra.mxu0 0.0
      %479 = vmatprep.subr.mxu0 0.0
      %480 = vmatpush1.msra.mxu0 0.0
      %481 = vmatprep.subr.mxu0 0.0
      %482 = vmatpush1.msra.mxu0 0.0
      %483 = vmatprep.subr.mxu0 0.0
      %484 = vmatpush1.msra.mxu0 0.0
      %485 = vmatprep.subr.mxu0 0.0
      %486 = vmatpush1.msra.mxu0 0.0
      %487 = vmatprep.subr.mxu0 0.0
      %488 = vmatpush1.msra.mxu0 0.0
      %489 = vmatprep.subr.mxu0 0.0
      %490 = vmatpush1.msra.mxu0 0.0
      %491 = vmatprep.subr.mxu0 0.0
      %492 = vmatpush1.msra.mxu0 0.0
      %493 = vmatprep.subr.mxu0 0.0
      %494 = vmatpush1.msra.mxu0 0.0
      %495 = vmatprep.subr.mxu0 0.0
      %496 = vmatpush1.msra.mxu0 0.0
      %497 = vmatprep.subr.mxu0 0.0
      %498 = vmatpush1.msra.mxu0 0.0
      %499 = vmatprep.subr.mxu0 0.0
      %500 = vmatpush1.msra.mxu0 0.0
      %501 = vmatprep.subr.mxu0 0.0
      %502 = vmatpush1.msra.mxu0 0.0
      %503 = vmatprep.subr.mxu0 0.0
      %504 = vmatpush1.msra.mxu0 0.0
      %505 = vmatprep.subr.mxu0 0.0
      %506 = vmatpush1.msra.mxu0 0.0
      %507 = vmatprep.subr.mxu0 0.0
      %508 = vmatpush1.msra.mxu0 0.0
      %509 = vmatprep.subr.mxu0 0.0
      %510 = vmatpush1.msra.mxu0 0.0
      %511 = vmatprep.subr.mxu0 0.0
      %512 = vmatpush1.msra.mxu0 0.0
      %513 = vmatprep.subr.mxu0 0.0
      %514 = vmatpush1.msra.mxu0 0.0
      %515 = vmatprep.subr.mxu0 0.0
      %516 = vmatpush1.msra.mxu0 0.0
      %517 = vmatprep.subr.mxu0 0.0
      %518 = vmatpush1.msra.mxu0 0.0
      %519 = vmatprep.subr.mxu0 0.0
      %520 = vmatpush1.msra.mxu0 0.0
      %521 = vmatprep.subr.mxu0 0.0
      %522 = vmatpush1.msra.mxu0 0.0
      %523 = vmatprep.subr.mxu0 0.0
      %524 = vmatpush1.msra.mxu0 0.0
      %525 = vmatprep.subr.mxu0 0.0
      %526 = vmatpush1.msra.mxu0 0.0
      %527 = vmatprep.subr.mxu0 0.0
      %528 = vmatpush1.msra.mxu0 0.0
      %529 = vmatprep.mubr.f32.mxu0 0.0
      %530 = vmatmul.mubr.f32.gmra.mrb[0].mxu0 %v463
      %v531 = vpop.f32.mrb[0].mxu0
      %v532 = vadd.f32 %v461, %v531
      %v533 = vpop.f32.mrb[0].mxu0
      %534 = vdwg.mxu0
      %vm535 = vcmask 122880
      %536 = vst.msk [vmem:[%s193] sm:$0x1] %vm535, %v532
      %p537 = scmp.lt.s32.totalorder %s15, 1
      %s538 = scalar_select %p537, %s15, 1
      %s539 = scalar_lea.vmem %s4, %s538
      // Predicated region
      $region37: #{novel_kqr_attention_forward.4} parent=35 // pred_check
        %p540 = pneg %p122
      $region38: #{novel_kqr_attention_forward.4} parent=35 // pred_check_branch
        %542 = sbr.rel (%p540) target = $region40
      $region39: #{novel_kqr_attention_forward.4} parent=35 // pred_region
        _
      $region40: #{novel_kqr_attention_forward.4} parent=35 // pred_fallthru
        _
    $region36: #{novel_kqr_attention_forward.4} parent=5 // pred_fallthru
      _
    %p543 = scmp.le.s32.totalorder 2, %s10
    // Predicated region
    $region41: #{novel_kqr_attention_forward.4} parent=5 // pred_check
      %p544 = pneg %p543
    $region42: #{novel_kqr_attention_forward.4} parent=5 // pred_check_branch
      %546 = sbr.rel (%p544) target = $region44
    $region43: #{novel_kqr_attention_forward.4} parent=5 // pred_region
      %s547 = ssub.s32 %s10, 2
      // Predicated region
      $region45: #{novel_kqr_attention_forward.4} parent=43 // pred_check
        %p548 = pneg %p128
      $region46: #{novel_kqr_attention_forward.4} parent=43 // pred_check_branch
        %550 = sbr.rel (%p548) target = $region48
      $region47: #{novel_kqr_attention_forward.4} parent=43 // pred_region
        %p551 = scmp.lt.s32.totalorder %s16, 1
        %s552 = scalar_select %p551, %s16, 1
        %s553 = scalar_lea.vmem %s4, %s552
      $region48: #{novel_kqr_attention_forward.4} parent=43 // pred_fallthru
        _
    $region44: #{novel_kqr_attention_forward.4} parent=5 // pred_fallthru
      _
  $region6: #{novel_kqr_attention_forward.4} parent=0 // loop_footer
    %s14 = sadd.s32 1, %s10
  $region7: #{novel_kqr_attention_forward.4} parent=0 // loop_footer_branch
    %9 = sbr.rel target = $region3
  $region8: #{novel_kqr_attention_forward.4} parent=0 // loop_exit
    _

</llo_original>
